<compile_context>
chip_gen: v6e
topology: v6e:2x2x1
jax: 0.10.0
libtpu: 0.0.40
codegen_flags: <defaults>
</compile_context>

<pallas_src>
import functools

import jax
import jax.numpy as jnp
from jax.experimental import pallas as pl
from jax.experimental.pallas import tpu as pltpu


def _round_up(x, m):
    return ((x + m - 1) // m) * m


def _bf16_eup_ok():
    """bf16 tanh/sigmoid only pays off where the EUP has a bf16 path (v6e/v7x)."""
    try:
        kind = jax.devices()[0].device_kind.lower()
    except Exception:
        return False
    return ("v6" in kind) or ("v7" in kind)


def _discriminator_kernel(xT_ref, w1t_ref, b1_ref, w2t_ref, b2_ref, w3t_ref,
                          b3_ref, o_ref, *, act_dtype):
    # Feature-major: activations are (features, batch_tile); batch is on lanes.
    xT = xT_ref[...]                                       # bf16 (in_dim, tb)

    # Layer 1: (64, in_dim) @ (in_dim, tb) -> (64, tb), f32 accumulate on MXU.
    h1 = jnp.dot(w1t_ref[...], xT, preferred_element_type=jnp.float32) + b1_ref[...]
    h1 = jnp.tanh(h1.astype(act_dtype)).astype(jnp.bfloat16)

    # Layer 2: (64, 64) @ (64, tb) -> (64, tb).
    h2 = jnp.dot(w2t_ref[...], h1, preferred_element_type=jnp.float32) + b2_ref[...]
    h2 = jnp.tanh(h2.astype(act_dtype)).astype(jnp.bfloat16)

    # Layer 3: (8, 64) @ (64, tb) -> (8, tb); only sublane row 0 is real (rows
    # 1..7 are zero-weight MXU padding). Slice it BEFORE the sigmoid so the
    # EUP does exactly one tanh per batch element.
    h3 = jnp.dot(w3t_ref[...], h2, preferred_element_type=jnp.float32)
    z = h3[0:1, :] + b3_ref[...]                           # (1, tb) f32
    # sigmoid(z) == 0.5 * (tanh(0.5 * z) + 1): exact identity, stays on the EUP.
    s = jnp.tanh((0.5 * z).astype(act_dtype)).astype(jnp.float32)
    o_ref[...] = (0.5 * (s + 1.0)).astype(o_ref.dtype)     # lane-dense (1, tb) store


def discriminator_forward(x, params, *, tb=8192):
    """x: (B, state_dim + action_dim) float32; returns (B, 1) float32."""
    w1, b1, w2, b2, w3, b3 = params
    B, in_dim = x.shape

    # Batch maps to the lane dimension -> tile must be a multiple of 128.
    tb = max(128, min(tb, _round_up(B, 128)))
    tb = _round_up(tb, 128)
    b_pad = _round_up(B, tb)

    # Feature-major input; pad batch (extra columns are sliced off below).
    xT = x.T
    if b_pad != B:
        xT = jnp.pad(xT, ((0, 0), (0, b_pad - B)))
    xT_bf = xT.astype(jnp.bfloat16)

    # Weights transposed to (out, in) for feature-major matmuls; bf16 for MXU.
    w1t = w1.T.astype(jnp.bfloat16)                        # (64, in_dim)
    w2t = w2.T.astype(jnp.bfloat16)                        # (64, 64)
    # Layer-3 weight padded to 8 sublane rows (rows 1..7 zero, sliced in-kernel).
    w3t = jnp.zeros((8, w3.shape[0]), jnp.float32).at[0, :].set(w3[:, 0])
    w3t = w3t.astype(jnp.bfloat16)                         # (8, 64)

    # Biases as columns (broadcast across the batch/lane dim); f32.
    b1c = b1.reshape(-1, 1).astype(jnp.float32)            # (64, 1)
    b2c = b2.reshape(-1, 1).astype(jnp.float32)            # (64, 1)
    b3c = b3.reshape(1, 1).astype(jnp.float32)             # (1, 1)

    act_dtype = jnp.bfloat16 if _bf16_eup_ok() else jnp.float32

    grid = (b_pad // tb,)

    out = pl.pallas_call(
        functools.partial(_discriminator_kernel, act_dtype=act_dtype),
        out_shape=jax.ShapeDtypeStruct((1, b_pad), jnp.float32),
        grid=grid,
        in_specs=[
            # x: one batch tile per grid step (auto double-buffered).
            pl.BlockSpec((in_dim, tb), lambda i: (0, i)),
            # weights / biases: constant index_map -> VMEM-resident, no re-DMA.
            pl.BlockSpec(w1t.shape, lambda i: (0, 0)),
            pl.BlockSpec(b1c.shape, lambda i: (0, 0)),
            pl.BlockSpec(w2t.shape, lambda i: (0, 0)),
            pl.BlockSpec(b2c.shape, lambda i: (0, 0)),
            pl.BlockSpec(w3t.shape, lambda i: (0, 0)),
            pl.BlockSpec(b3c.shape, lambda i: (0, 0)),
        ],
        out_specs=pl.BlockSpec((1, tb), lambda i: (0, i)),
        compiler_params=pltpu.CompilerParams(
            dimension_semantics=("parallel",),              # shard batch tiles across TCs
            vmem_limit_bytes=32 * 1024 * 1024,              # plenty; fits v5e/v6e/v7x
        ),
    )(xT_bf, w1t, b1c, w2t, b2c, w3t, b3c)

    # Drop batch padding, restore (B, 1).
    return out[0, :B].reshape(B, 1)


def init_params(key, state_dim, action_dim):
    """Deterministic init matching the PyTorch module's layer shapes.

    PyTorch nn.Linear(in, out) stores weight (out, in); we store the transpose
    (in, out) so the reference computes x @ W + b with identical semantics.
    """
    in_dim = state_dim + action_dim
    k1, k2, k3, k4, k5, k6 = jax.random.split(key, 6)

    def u(k, shape, fan_in):
        bound = 1.0 / jnp.sqrt(fan_in)
        return jax.random.uniform(k, shape, jnp.float32, -bound, bound)

    w1 = u(k1, (in_dim, 64), in_dim)
    b1 = u(k2, (64,), in_dim)
    w2 = u(k3, (64, 64), 64)
    b2 = u(k4, (64,), 64)
    w3 = u(k5, (64, 1), 64)
    b3 = u(k6, (1,), 64)
    return (w1, b1, w2, b2, w3, b3)


def reference_forward(x, params):
    w1, b1, w2, b2, w3, b3 = params
    h = jnp.tanh(x @ w1 + b1)
    h = jnp.tanh(h @ w2 + b2)
    return jax.nn.sigmoid(h @ w3 + b3)


if __name__ == "__main__":
    state_dim, action_dim = 8, 4
    batch = 8

    key = jax.random.PRNGKey(0)
    kx, kp, kx2 = jax.random.split(key, 3)
    params = init_params(kp, state_dim, action_dim)
    x = jax.random.normal(kx, (batch, state_dim + action_dim), jnp.float32)

    out = discriminator_forward(x, params)
    out = jax.block_until_ready(out)

    ref = reference_forward(x, params)
    assert out.shape == (batch, 1), out.shape
    # bf16 weights/activations (and bf16 tanh on v6e/v7x) vs f32 reference.
    assert jnp.allclose(out, ref, atol=2.5e-2, rtol=0.0), (out, ref)

    # Second check: batch not divisible by the tile (exercises grid + padding).
    x2 = jax.random.normal(kx2, (300, state_dim + action_dim), jnp.float32)
    out2 = jax.block_until_ready(discriminator_forward(x2, params, tb=128))
    ref2 = reference_forward(x2, params)
    assert out2.shape == (300, 1), out2.shape
    assert jnp.allclose(out2, ref2, atol=2.5e-2, rtol=0.0)

    print("KERNEL_OK")
</pallas_src>

<mosaic_0001>
module attributes {stable_mosaic.version = 11 : i64} {
  func.func @_discriminator_kernel(%arg0: i32, %arg1: memref<12x128xbf16, #tpu.memory_space<vmem>>, %arg2: memref<64x12xbf16, #tpu.memory_space<vmem>>, %arg3: memref<64x1xf32, #tpu.memory_space<vmem>>, %arg4: memref<64x64xbf16, #tpu.memory_space<vmem>>, %arg5: memref<64x1xf32, #tpu.memory_space<vmem>>, %arg6: memref<8x64xbf16, #tpu.memory_space<vmem>>, %arg7: memref<1x1xf32, #tpu.memory_space<vmem>>, %arg8: memref<1x128xf32, #tpu.memory_space<vmem>>) attributes {dimension_semantics = [#tpu.dimension_semantics<parallel>], iteration_bounds = array<i64: 1>, scalar_prefetch = 0 : i64, scratch_operands = 0 : i64, tpu.core_type = #tpu.core_type<tc>, window_params = [{transform_indices = @transform_0, window_bounds = array<i64: 12, 128>}, {pipeline_mode = #tpu.pipeline_mode<synchronous>, transform_indices = @transform_1, window_bounds = array<i64: 64, 12>}, {pipeline_mode = #tpu.pipeline_mode<synchronous>, transform_indices = @transform_2, window_bounds = array<i64: 64, 1>}, {pipeline_mode = #tpu.pipeline_mode<synchronous>, transform_indices = @transform_3, window_bounds = array<i64: 64, 64>}, {pipeline_mode = #tpu.pipeline_mode<synchronous>, transform_indices = @transform_4, window_bounds = array<i64: 64, 1>}, {pipeline_mode = #tpu.pipeline_mode<synchronous>, transform_indices = @transform_5, window_bounds = array<i64: 8, 64>}, {pipeline_mode = #tpu.pipeline_mode<synchronous>, transform_indices = @transform_6, window_bounds = array<i64: 1, 1>}, {transform_indices = @transform_7, window_bounds = array<i64: 1, 128>}]} {
    %c0 = arith.constant 0 : index
    %c0_0 = arith.constant 0 : index
    %0 = vector.load %arg1[%c0, %c0_0] : memref<12x128xbf16, #tpu.memory_space<vmem>>, vector<12x128xbf16>
    %c0_1 = arith.constant 0 : index
    %c0_2 = arith.constant 0 : index
    %1 = vector.load %arg2[%c0_1, %c0_2] : memref<64x12xbf16, #tpu.memory_space<vmem>>, vector<64x12xbf16>
    %cst = arith.constant dense<0.000000e+00> : vector<64x128xf32>
    %2 = tpu.matmul %1, %0, %cst {dimension_numbers = #tpu.dot_dimension_numbers<[1], [0], [0], [1], [0, 0, 1, 1], [], []>} : vector<64x12xbf16>, vector<12x128xbf16>, vector<64x128xf32> -> vector<64x128xf32>
    %c0_3 = arith.constant 0 : index
    %c0_4 = arith.constant 0 : index
    %3 = vector.load %arg3[%c0_3, %c0_4] : memref<64x1xf32, #tpu.memory_space<vmem>>, vector<64x1xf32>
    %4 = vector.broadcast %3 : vector<64x1xf32> to vector<64x128xf32>
    %5 = arith.addf %2, %4 : vector<64x128xf32>
    %6 = math.tanh %5 : vector<64x128xf32>
    %7 = arith.truncf %6 : vector<64x128xf32> to vector<64x128xbf16>
    %c0_5 = arith.constant 0 : index
    %c0_6 = arith.constant 0 : index
    %8 = vector.load %arg4[%c0_5, %c0_6] : memref<64x64xbf16, #tpu.memory_space<vmem>>, vector<64x64xbf16>
    %cst_7 = arith.constant dense<0.000000e+00> : vector<64x128xf32>
    %9 = tpu.matmul %8, %7, %cst_7 {dimension_numbers = #tpu.dot_dimension_numbers<[1], [0], [0], [1], [0, 0, 1, 1], [], []>} : vector<64x64xbf16>, vector<64x128xbf16>, vector<64x128xf32> -> vector<64x128xf32>
    %c0_8 = arith.constant 0 : index
    %c0_9 = arith.constant 0 : index
    %10 = vector.load %arg5[%c0_8, %c0_9] : memref<64x1xf32, #tpu.memory_space<vmem>>, vector<64x1xf32>
    %11 = vector.broadcast %10 : vector<64x1xf32> to vector<64x128xf32>
    %12 = arith.addf %9, %11 : vector<64x128xf32>
    %13 = math.tanh %12 : vector<64x128xf32>
    %14 = arith.truncf %13 : vector<64x128xf32> to vector<64x128xbf16>
    %c0_10 = arith.constant 0 : index
    %c0_11 = arith.constant 0 : index
    %15 = vector.load %arg6[%c0_10, %c0_11] : memref<8x64xbf16, #tpu.memory_space<vmem>>, vector<8x64xbf16>
    %cst_12 = arith.constant dense<0.000000e+00> : vector<8x128xf32>
    %16 = tpu.matmul %15, %14, %cst_12 {dimension_numbers = #tpu.dot_dimension_numbers<[1], [0], [0], [1], [0, 0, 1, 1], [], []>} : vector<8x64xbf16>, vector<64x128xbf16>, vector<8x128xf32> -> vector<8x128xf32>
    %17 = vector.extract_strided_slice %16 {offsets = [0, 0], sizes = [1, 128], strides = [1, 1]} : vector<8x128xf32> to vector<1x128xf32>
    %c0_13 = arith.constant 0 : index
    %c0_14 = arith.constant 0 : index
    %18 = vector.load %arg7[%c0_13, %c0_14] : memref<1x1xf32, #tpu.memory_space<vmem>>, vector<1x1xf32>
    %19 = vector.broadcast %18 : vector<1x1xf32> to vector<1x128xf32>
    %20 = arith.addf %17, %19 : vector<1x128xf32>
    %cst_15 = arith.constant 5.000000e-01 : f32
    %21 = vector.broadcast %cst_15 : f32 to vector<1x128xf32>
    %22 = arith.mulf %21, %20 : vector<1x128xf32>
    %23 = math.tanh %22 : vector<1x128xf32>
    %cst_16 = arith.constant 1.000000e+00 : f32
    %24 = vector.broadcast %cst_16 : f32 to vector<1x128xf32>
    %25 = arith.addf %23, %24 : vector<1x128xf32>
    %cst_17 = arith.constant 5.000000e-01 : f32
    %26 = vector.broadcast %cst_17 : f32 to vector<1x128xf32>
    %27 = arith.mulf %26, %25 : vector<1x128xf32>
    %c0_18 = arith.constant 0 : index
    %c0_19 = arith.constant 0 : index
    %28 = vector.load %arg8[%c0_18, %c0_19] : memref<1x128xf32, #tpu.memory_space<vmem>>, vector<1x128xf32>
    tpu.vector_store %arg8[%c0_18, %c0_19], %27 {strides = array<i32>} : memref<1x128xf32, #tpu.memory_space<vmem>>, vector<1x128xf32>,
    return
  }
  func.func @transform_0(%arg0: i32) -> (i32, i32) {
    %c0_i32 = arith.constant 0 : i32
    %c0_i32_0 = arith.constant 0 : i32
    return %c0_i32, %arg0 : i32, i32
  }
  func.func @transform_1(%arg0: i32) -> (i32, i32) {
    %c0_i32 = arith.constant 0 : i32
    %c0_i32_0 = arith.constant 0 : i32
    %c0_i32_1 = arith.constant 0 : i32
    return %c0_i32, %c0_i32_0 : i32, i32
  }
  func.func @transform_2(%arg0: i32) -> (i32, i32) {
    %c0_i32 = arith.constant 0 : i32
    %c0_i32_0 = arith.constant 0 : i32
    %c0_i32_1 = arith.constant 0 : i32
    return %c0_i32, %c0_i32_0 : i32, i32
  }
  func.func @transform_3(%arg0: i32) -> (i32, i32) {
    %c0_i32 = arith.constant 0 : i32
    %c0_i32_0 = arith.constant 0 : i32
    %c0_i32_1 = arith.constant 0 : i32
    return %c0_i32, %c0_i32_0 : i32, i32
  }
  func.func @transform_4(%arg0: i32) -> (i32, i32) {
    %c0_i32 = arith.constant 0 : i32
    %c0_i32_0 = arith.constant 0 : i32
    %c0_i32_1 = arith.constant 0 : i32
    return %c0_i32, %c0_i32_0 : i32, i32
  }
  func.func @transform_5(%arg0: i32) -> (i32, i32) {
    %c0_i32 = arith.constant 0 : i32
    %c0_i32_0 = arith.constant 0 : i32
    %c0_i32_1 = arith.constant 0 : i32
    return %c0_i32, %c0_i32_0 : i32, i32
  }
  func.func @transform_6(%arg0: i32) -> (i32, i32) {
    %c0_i32 = arith.constant 0 : i32
    %c0_i32_0 = arith.constant 0 : i32
    %c0_i32_1 = arith.constant 0 : i32
    return %c0_i32, %c0_i32_0 : i32, i32
  }
  func.func @transform_7(%arg0: i32) -> (i32, i32) {
    %c0_i32 = arith.constant 0 : i32
    %c0_i32_0 = arith.constant 0 : i32
    return %c0_i32, %arg0 : i32, i32
  }
}

</mosaic_0001>

<llo_original>
// kernel: tpu_custom_call.1
$region0: #{tpu_custom_call.1}
  #allocation0 [shape = 'u32[]', space=smem, size = 0x4, offset = 0x4, fixed_abs, tag = 'smem constant byte address 0x4 - core index']
  #allocation1 [shape = 'u32[144,128]{1,0:T(1,128)}', space=vmem, size = 0x12000, scoped, tag = 'internal scratch']
  #allocation2 [shape = 'f32[1,1]{1,0:T(1,128)S(1)}', space=vmem, size = 0x200, scoped, tag = 'scoped memory for tpu_custom_call.1']
  %s0 = inlined_call_operand.vmem [shape: bf16[12,128], index: 0, kind: input, shape index: {}]
  %s1 = inlined_call_operand.vmem [shape: bf16[64,12], index: 1, kind: input, shape index: {}]
  %s2 = inlined_call_operand.vmem [shape: f32[64,1], index: 2, kind: input, shape index: {}]
  %s3 = inlined_call_operand.vmem [shape: bf16[64,64], index: 3, kind: input, shape index: {}]
  %s4 = inlined_call_operand.vmem [shape: f32[64,1], index: 4, kind: input, shape index: {}]
  %s5 = inlined_call_operand.vmem [shape: bf16[8,64], index: 5, kind: input, shape index: {}]
  %s6 = inlined_call_operand.<no memory space> [shape: f32[1,1], index: 6, kind: input, shape index: {}]
  %s7 = inlined_call_operand.hbm [shape: f32[1,128], index: 7, kind: output, shape index: {}]
  %s8 = sld [smem:[#allocation0]]
  $region38: #{tpu_custom_call.1} parent=0
    _
  %s10 = ssub.s32 1, %s8
  %s11 = scalar_select 0, %s10, %s8
  %v12 = vstv %s6
  %13 = vst [vmem:[#allocation2] sm:$0x1] %v12
  $region1: #{tpu_custom_call.1} parent=0
    #allocation3 [shape = 'u8[512]{0}', space=vmem, size = 0x400, scoped, tag = 'output window, operand 0, single buffered']
    #allocation4 [shape = 's32[1]{0}', space=sflag, size = 0x4, scoped, tag = 'scoped memory for tpu_custom_call.1']
    %14 = vsyncpa [#allocation4], 0
    // Predicated region
    $region2: #{tpu_custom_call.1} parent=1 // pred_check
      _
    $region3: #{tpu_custom_call.1} parent=1 // pred_check_branch
      %16 = sbr.rel (0) target = $region5
    $region4: #{tpu_custom_call.1} parent=1 // pred_region
      _
    $region5: #{tpu_custom_call.1} parent=1 // pred_fallthru
      _
    // Predicated region
    $region6: #{tpu_custom_call.1} parent=1 // pred_check
      _
    $region7: #{tpu_custom_call.1} parent=1 // pred_check_branch
      %18 = sbr.rel (0) target = $region9
    $region8: #{tpu_custom_call.1} parent=1 // pred_region
      _
    $region9: #{tpu_custom_call.1} parent=1 // pred_fallthru
      _
    // Predicated region
    $region10: #{tpu_custom_call.1} parent=1 // pred_check
      _
    $region11: #{tpu_custom_call.1} parent=1 // pred_check_branch
      %20 = sbr.rel (0) target = $region13
    $region12: #{tpu_custom_call.1} parent=1 // pred_region
      _
    $region13: #{tpu_custom_call.1} parent=1 // pred_fallthru
      _
    // Predicated region
    $region14: #{tpu_custom_call.1} parent=1 // pred_check
      _
    $region15: #{tpu_custom_call.1} parent=1 // pred_check_branch
      %22 = sbr.rel (0) target = $region17
    $region16: #{tpu_custom_call.1} parent=1 // pred_region
      _
    $region17: #{tpu_custom_call.1} parent=1 // pred_fallthru
      _
    // Predicated region
    $region18: #{tpu_custom_call.1} parent=1 // pred_check
      _
    $region19: #{tpu_custom_call.1} parent=1 // pred_check_branch
      %24 = sbr.rel (0) target = $region21
    $region20: #{tpu_custom_call.1} parent=1 // pred_region
      _
    $region21: #{tpu_custom_call.1} parent=1 // pred_fallthru
      _
    // Predicated region
    $region22: #{tpu_custom_call.1} parent=1 // pred_check
      _
    $region23: #{tpu_custom_call.1} parent=1 // pred_check_branch
      %26 = sbr.rel (0) target = $region25
    $region24: #{tpu_custom_call.1} parent=1 // pred_region
      _
    $region25: #{tpu_custom_call.1} parent=1 // pred_fallthru
      _
    // Predicated region
    $region26: #{tpu_custom_call.1} parent=1 // pred_check
      _
    $region27: #{tpu_custom_call.1} parent=1 // pred_check_branch
      %28 = sbr.rel (0) target = $region29
    $region28: #{tpu_custom_call.1} parent=1 // pred_region
      _
    $region29: #{tpu_custom_call.1} parent=1 // pred_fallthru
      _
    %v30 = vld [vmem:[%s0] sm:$0xf]
    %v31 = vld [vmem:[%s0 + $0x4] sm:$0x3]
    %v32 = vld [vmem:[%s1] sm:$0xf]
    %v33 = vld [vmem:[%s1 + $0x4] sm:$0xf]
    %v34 = vld [vmem:[%s1 + $0x8] sm:$0xf]
    %v35 = vld [vmem:[%s1 + $0xc] sm:$0xf]
    %v36 = vld [vmem:[%s1 + $0x10] sm:$0xf]
    %v37 = vld [vmem:[%s1 + $0x14] sm:$0xf]
    %v38 = vld [vmem:[%s1 + $0x18] sm:$0xf]
    %v39 = vld [vmem:[%s1 + $0x1c] sm:$0xf]
    %v40 = vld [vmem:[%s2] sm:$0xff]
    %v41 = vld [vmem:[%s2 + $0x8] sm:$0xff]
    %v42 = vld [vmem:[%s2 + $0x10] sm:$0xff]
    %v43 = vld [vmem:[%s2 + $0x18] sm:$0xff]
    %v44 = vld [vmem:[%s2 + $0x20] sm:$0xff]
    %v45 = vld [vmem:[%s2 + $0x28] sm:$0xff]
    %v46 = vld [vmem:[%s2 + $0x30] sm:$0xff]
    %v47 = vld [vmem:[%s2 + $0x38] sm:$0xff]
    %49 = vset.pattern.permute.xlu0 0
    %50 = vperm.xlu0 %49, %v40
    %v51 = vpop.permute.xlu0 %50
    %54 = vset.pattern.permute.xlu0 0
    %55 = vperm.xlu0 %54, %v41
    %v56 = vpop.permute.xlu0 %55
    %59 = vset.pattern.permute.xlu0 0
    %60 = vperm.xlu0 %59, %v42
    %v61 = vpop.permute.xlu0 %60
    %64 = vset.pattern.permute.xlu0 0
    %65 = vperm.xlu0 %64, %v43
    %v66 = vpop.permute.xlu0 %65
    %69 = vset.pattern.permute.xlu0 0
    %70 = vperm.xlu0 %69, %v44
    %v71 = vpop.permute.xlu0 %70
    %74 = vset.pattern.permute.xlu0 0
    %75 = vperm.xlu0 %74, %v45
    %v76 = vpop.permute.xlu0 %75
    %79 = vset.pattern.permute.xlu0 0
    %80 = vperm.xlu0 %79, %v46
    %v81 = vpop.permute.xlu0 %80
    %84 = vset.pattern.permute.xlu0 0
    %85 = vperm.xlu0 %84, %v47
    %v86 = vpop.permute.xlu0 %85
    %v96 = vunpack.c.l.b16 %v32
    %v97 = vunpack.c.l.b16 %v33
    %v98 = vunpack.c.l.b16 %v34
    %v99 = vunpack.c.l.b16 %v35
    %v100 = vunpack.c.l.b16 %v36
    %v101 = vunpack.c.l.b16 %v37
    %v102 = vunpack.c.l.b16 %v38
    %v103 = vunpack.c.l.b16 %v39
    %v104 = vpack.c.b16 %v97, %v96
    %v105 = vpack.c.b16 %v99, %v98
    %v106 = vpack.c.b16 %v101, %v100
    %v107 = vpack.c.b16 %v103, %v102
    %v110 = vunpack.c.l.b16 %v30
    %v111 = vunpack.c.l.b16 %v31
    %v112 = vpack.c.b16 %v111, %v110
    %vm113 = vcmask 97280
    %v115 = vsel %vm113, %v104, 0
    %v118 = vsel %vm113, %v105, 0
    %v121 = vsel %vm113, %v106, 0
    %v124 = vsel %vm113, %v107, 0
    %vm126 = vcmask 1045504
    %v128 = vsel %vm126, %v112, 0
    %130 = vmatprep.subr.bf16.mxu0 0
    %131 = vmatpush1.bf16.msra.mxu0 0
    %132 = vmatprep.subr.bf16.mxu0 0
    %133 = vmatpush1.bf16.msra.mxu0 0
    %134 = vmatprep.subr.bf16.mxu0 0
    %135 = vmatpush1.bf16.msra.mxu0 0
    %136 = vmatprep.subr.bf16.mxu0 0
    %137 = vmatpush1.bf16.msra.mxu0 0
    %138 = vmatprep.subr.bf16.mxu0 0
    %139 = vmatpush1.bf16.msra.mxu0 0
    %140 = vmatprep.subr.bf16.mxu0 0
    %141 = vmatpush1.bf16.msra.mxu0 0
    %142 = vmatprep.subr.bf16.mxu0 0
    %143 = vmatpush1.bf16.msra.mxu0 0
    %144 = vmatprep.subr.bf16.mxu0 0
    %145 = vmatpush1.bf16.msra.mxu0 %v128
    %146 = vmatprep.subr.bf16.mxu0 0
    %147 = vmatpush2.bf16.msra.mxu0 0
    %148 = vmatprep.subr.bf16.mxu0 0
    %149 = vmatpush2.bf16.msra.mxu0 0
    %150 = vmatprep.subr.bf16.mxu0 0
    %151 = vmatpush2.bf16.msra.mxu0 0
    %152 = vmatprep.subr.bf16.mxu0 0
    %153 = vmatpush2.bf16.msra.mxu0 0
    %154 = vmatprep.subr.bf16.mxu0 0
    %155 = vmatpush2.bf16.msra.mxu0 0
    %156 = vmatprep.subr.bf16.mxu0 0
    %157 = vmatpush2.bf16.msra.mxu0 0
    %158 = vmatprep.subr.bf16.mxu0 0
    %159 = vmatpush2.bf16.msra.mxu0 0
    %160 = vmatprep.subr.bf16.mxu0 0
    %161 = vmatpush2.bf16.msra.mxu0 0
    %162 = vmatprep.mubr.bf16.mxu0 0
    %163 = vmatmul.mubr.bf16.gmra.mxu0 %v115
    %v164 = vpop.f32.mrf.mxu0
    %v165 = vadd.f32 %v51, %v164
    %v166 = vpop.f32.mrf.mxu0
    %v167 = vpop.f32.mrf.mxu0
    %v168 = vadd.f32 %v56, %v167
    %v169 = vpop.f32.mrf.mxu0
    %170 = vmatprep.mubr.bf16.mxu0 0
    %171 = vmatmul.mubr.bf16.gmra.mxu0 %v118
    %v172 = vpop.f32.mrf.mxu0
    %v173 = vadd.f32 %v61, %v172
    %v174 = vpop.f32.mrf.mxu0
    %v175 = vpop.f32.mrf.mxu0
    %v176 = vadd.f32 %v66, %v175
    %v177 = vpop.f32.mrf.mxu0
    %178 = vmatprep.mubr.bf16.mxu0 0
    %179 = vmatmul.mubr.bf16.gmra.mxu0 %v121
    %v180 = vpop.f32.mrf.mxu0
    %v181 = vadd.f32 %v71, %v180
    %v182 = vpop.f32.mrf.mxu0
    %v183 = vpop.f32.mrf.mxu0
    %v184 = vadd.f32 %v76, %v183
    %v185 = vpop.f32.mrf.mxu0
    %186 = vmatprep.mubr.bf16.mxu0 0
    %187 = vmatmul.mubr.bf16.gmra.mxu0 %v124
    %v188 = vpop.f32.mrf.mxu0
    %v189 = vadd.f32 %v81, %v188
    %v190 = vpop.f32.mrf.mxu0
    %v191 = vpop.f32.mrf.mxu0
    %v192 = vadd.f32 %v86, %v191
    %v193 = vpop.f32.mrf.mxu0
    %194 = vdwg.mxu0
    %v195 = vtanh.pop %v165
    %v196 = vtanh.pop %v168
    %v197 = vtanh.pop %v173
    %v198 = vtanh.pop %v176
    %v199 = vtanh.pop %v181
    %v200 = vtanh.pop %v184
    %v201 = vtanh.pop %v189
    %v202 = vtanh.pop %v192
    %v203 = vpack.c.bf16 %v196, %v195
    %v204 = vpack.c.bf16 %v198, %v197
    %v205 = vpack.c.bf16 %v200, %v199
    %v206 = vpack.c.bf16 %v202, %v201
    %v207 = vld [vmem:[%s3] sm:$0xf]
    %v208 = vld [vmem:[%s3 + $0x4] sm:$0xf]
    %v209 = vld [vmem:[%s3 + $0x8] sm:$0xf]
    %v210 = vld [vmem:[%s3 + $0xc] sm:$0xf]
    %v211 = vld [vmem:[%s3 + $0x10] sm:$0xf]
    %v212 = vld [vmem:[%s3 + $0x14] sm:$0xf]
    %v213 = vld [vmem:[%s3 + $0x18] sm:$0xf]
    %v214 = vld [vmem:[%s3 + $0x1c] sm:$0xf]
    %v215 = vld [vmem:[%s4] sm:$0xff]
    %v216 = vld [vmem:[%s4 + $0x8] sm:$0xff]
    %v217 = vld [vmem:[%s4 + $0x10] sm:$0xff]
    %v218 = vld [vmem:[%s4 + $0x18] sm:$0xff]
    %v219 = vld [vmem:[%s4 + $0x20] sm:$0xff]
    %v220 = vld [vmem:[%s4 + $0x28] sm:$0xff]
    %v221 = vld [vmem:[%s4 + $0x30] sm:$0xff]
    %v222 = vld [vmem:[%s4 + $0x38] sm:$0xff]
    %224 = vset.pattern.permute.xlu0 0
    %225 = vperm.xlu0 %224, %v215
    %v226 = vpop.permute.xlu0 %225
    %229 = vset.pattern.permute.xlu0 0
    %230 = vperm.xlu0 %229, %v216
    %v231 = vpop.permute.xlu0 %230
    %234 = vset.pattern.permute.xlu0 0
    %235 = vperm.xlu0 %234, %v217
    %v236 = vpop.permute.xlu0 %235
    %239 = vset.pattern.permute.xlu0 0
    %240 = vperm.xlu0 %239, %v218
    %v241 = vpop.permute.xlu0 %240
    %244 = vset.pattern.permute.xlu0 0
    %245 = vperm.xlu0 %244, %v219
    %v246 = vpop.permute.xlu0 %245
    %249 = vset.pattern.permute.xlu0 0
    %250 = vperm.xlu0 %249, %v220
    %v251 = vpop.permute.xlu0 %250
    %254 = vset.pattern.permute.xlu0 0
    %255 = vperm.xlu0 %254, %v221
    %v256 = vpop.permute.xlu0 %255
    %259 = vset.pattern.permute.xlu0 0
    %260 = vperm.xlu0 %259, %v222
    %v261 = vpop.permute.xlu0 %260
    %v271 = vunpack.c.l.b16 %v207
    %v272 = vunpack.c.l.b16 %v208
    %v273 = vunpack.c.l.b16 %v209
    %v274 = vunpack.c.l.b16 %v210
    %v275 = vunpack.c.l.b16 %v211
    %v276 = vunpack.c.l.b16 %v212
    %v277 = vunpack.c.l.b16 %v213
    %v278 = vunpack.c.l.b16 %v214
    %v279 = vpack.c.b16 %v272, %v271
    %v280 = vpack.c.b16 %v274, %v273
    %v281 = vpack.c.b16 %v276, %v275
    %v282 = vpack.c.b16 %v278, %v277
    %vm283 = vcmask 523264
    %v285 = vsel %vm283, %v279, 0
    %v288 = vsel %vm283, %v280, 0
    %v291 = vsel %vm283, %v281, 0
    %v294 = vsel %vm283, %v282, 0
    %296 = vmatprep.subr.bf16.mxu0 0
    %297 = vmatpush1.bf16.msra.mxu0 0
    %298 = vmatprep.subr.bf16.mxu0 0
    %299 = vmatpush1.bf16.msra.mxu0 0
    %300 = vmatprep.subr.bf16.mxu0 0
    %301 = vmatpush1.bf16.msra.mxu0 0
    %302 = vmatprep.subr.bf16.mxu0 0
    %303 = vmatpush1.bf16.msra.mxu0 0
    %304 = vmatprep.subr.bf16.mxu0 0
    %305 = vmatpush1.bf16.msra.mxu0 %v206
    %306 = vmatprep.subr.bf16.mxu0 0
    %307 = vmatpush1.bf16.msra.mxu0 %v205
    %308 = vmatprep.subr.bf16.mxu0 0
    %309 = vmatpush1.bf16.msra.mxu0 %v204
    %310 = vmatprep.subr.bf16.mxu0 0
    %311 = vmatpush1.bf16.msra.mxu0 %v203
    %312 = vmatprep.subr.bf16.mxu0 0
    %313 = vmatpush2.bf16.msra.mxu0 0
    %314 = vmatprep.subr.bf16.mxu0 0
    %315 = vmatpush2.bf16.msra.mxu0 0
    %316 = vmatprep.subr.bf16.mxu0 0
    %317 = vmatpush2.bf16.msra.mxu0 0
    %318 = vmatprep.subr.bf16.mxu0 0
    %319 = vmatpush2.bf16.msra.mxu0 0
    %320 = vmatprep.subr.bf16.mxu0 0
    %321 = vmatpush2.bf16.msra.mxu0 0
    %322 = vmatprep.subr.bf16.mxu0 0
    %323 = vmatpush2.bf16.msra.mxu0 0
    %324 = vmatprep.subr.bf16.mxu0 0
    %325 = vmatpush2.bf16.msra.mxu0 0
    %326 = vmatprep.subr.bf16.mxu0 0
    %327 = vmatpush2.bf16.msra.mxu0 0
    %328 = vmatprep.mubr.bf16.mxu0 0
    %329 = vmatmul.mubr.bf16.gmra.mxu0 %v285
    %v330 = vpop.f32.mrf.mxu0
    %v331 = vadd.f32 %v226, %v330
    %v332 = vpop.f32.mrf.mxu0
    %v333 = vpop.f32.mrf.mxu0
    %v334 = vadd.f32 %v231, %v333
    %v335 = vpop.f32.mrf.mxu0
    %336 = vmatprep.mubr.bf16.mxu0 0
    %337 = vmatmul.mubr.bf16.gmra.mxu0 %v288
    %v338 = vpop.f32.mrf.mxu0
    %v339 = vadd.f32 %v236, %v338
    %v340 = vpop.f32.mrf.mxu0
    %v341 = vpop.f32.mrf.mxu0
    %v342 = vadd.f32 %v241, %v341
    %v343 = vpop.f32.mrf.mxu0
    %344 = vmatprep.mubr.bf16.mxu0 0
    %345 = vmatmul.mubr.bf16.gmra.mxu0 %v291
    %v346 = vpop.f32.mrf.mxu0
    %v347 = vadd.f32 %v246, %v346
    %v348 = vpop.f32.mrf.mxu0
    %v349 = vpop.f32.mrf.mxu0
    %v350 = vadd.f32 %v251, %v349
    %v351 = vpop.f32.mrf.mxu0
    %352 = vmatprep.mubr.bf16.mxu0 0
    %353 = vmatmul.mubr.bf16.gmra.mxu0 %v294
    %v354 = vpop.f32.mrf.mxu0
    %v355 = vadd.f32 %v256, %v354
    %v356 = vpop.f32.mrf.mxu0
    %v357 = vpop.f32.mrf.mxu0
    %v358 = vadd.f32 %v261, %v357
    %v359 = vpop.f32.mrf.mxu0
    %360 = vdwg.mxu0
    %v361 = vtanh.pop %v331
    %v362 = vtanh.pop %v334
    %v363 = vtanh.pop %v339
    %v364 = vtanh.pop %v342
    %v365 = vtanh.pop %v347
    %v366 = vtanh.pop %v350
    %v367 = vtanh.pop %v355
    %v368 = vtanh.pop %v358
    %v369 = vpack.c.bf16 %v362, %v361
    %v370 = vpack.c.bf16 %v364, %v363
    %v371 = vpack.c.bf16 %v366, %v365
    %v372 = vpack.c.bf16 %v368, %v367
    %v373 = vld [vmem:[%s5] sm:$0xf]
    %v375 = vsel %vm283, %v373, 0
    %377 = vmatprep.subr.bf16.mxu0 0
    %378 = vmatpush1.bf16.msra.mxu0 0
    %379 = vmatprep.subr.bf16.mxu0 0
    %380 = vmatpush1.bf16.msra.mxu0 0
    %381 = vmatprep.subr.bf16.mxu0 0
    %382 = vmatpush1.bf16.msra.mxu0 0
    %383 = vmatprep.subr.bf16.mxu0 0
    %384 = vmatpush1.bf16.msra.mxu0 0
    %385 = vmatprep.subr.bf16.mxu0 0
    %386 = vmatpush1.bf16.msra.mxu0 %v372
    %387 = vmatprep.subr.bf16.mxu0 0
    %388 = vmatpush1.bf16.msra.mxu0 %v371
    %389 = vmatprep.subr.bf16.mxu0 0
    %390 = vmatpush1.bf16.msra.mxu0 %v370
    %391 = vmatprep.subr.bf16.mxu0 0
    %392 = vmatpush1.bf16.msra.mxu0 %v369
    %393 = vmatprep.subr.bf16.mxu0 0
    %394 = vmatpush2.bf16.msra.mxu0 0
    %395 = vmatprep.subr.bf16.mxu0 0
    %396 = vmatpush2.bf16.msra.mxu0 0
    %397 = vmatprep.subr.bf16.mxu0 0
    %398 = vmatpush2.bf16.msra.mxu0 0
    %399 = vmatprep.subr.bf16.mxu0 0
    %400 = vmatpush2.bf16.msra.mxu0 0
    %401 = vmatprep.subr.bf16.mxu0 0
    %402 = vmatpush2.bf16.msra.mxu0 0
    %403 = vmatprep.subr.bf16.mxu0 0
    %404 = vmatpush2.bf16.msra.mxu0 0
    %405 = vmatprep.subr.bf16.mxu0 0
    %406 = vmatpush2.bf16.msra.mxu0 0
    %407 = vmatprep.subr.bf16.mxu0 0
    %408 = vmatpush2.bf16.msra.mxu0 0
    %409 = vmatprep.mubr.bf16.mxu0 0
    %410 = vmatmul.mubr.bf16.gmra.mxu0 %v375
    %v411 = vpop.f32.mrf.mxu0
    %v412 = vadd.f32 0.0, %v411
    %v413 = vpop.f32.mrf.mxu0
    %v414 = vpop.f32.mrf.mxu0
    %v415 = vpop.f32.mrf.mxu0
    %416 = vdwg.mxu0
    %v417 = vld [vmem:[#allocation2] sm:$0x1]
    %419 = vset.pattern.permute.xlu0 0
    %420 = vperm.xlu0 %419, %v417
    %v421 = vpop.permute.xlu0 %420
    %v423 = vlaneseq
    %v424 = vshrl.u32 %v423, 7
    %v425 = vsub.s32 0, %v424
    %v426 = vrot.slane %v421, %v425
    %v427 = vadd.f32 %v412, %v426
    %v428 = vmul.f32 %v427, 0.5
    %v429 = vtanh.pop %v428
    %v430 = vadd.f32 %v429, 1.0
    %v431 = vmul.f32 %v430, 0.5
    %432 = vst [vmem:[#allocation3] sm:$0x1] %v431
    // Predicated region
    $region30: #{tpu_custom_call.1} parent=1 // pred_check
      _
    $region31: #{tpu_custom_call.1} parent=1 // pred_check_branch
      %434 = sbr.rel (0) target = $region33
    $region32: #{tpu_custom_call.1} parent=1 // pred_region
      %s436 = ssub.s32 16, 16
      %437 = vsyncadd [#allocation4], %s436
      %s439 = sshll.u32 [#allocation3], 4
      %s440 = int_to_ptr.vmem [resolvable:$true] %s439
      %442 = dma.vmem_to_hbm [thread:$0]  %s440, 16, %s7, [#allocation4]
    $region33: #{tpu_custom_call.1} parent=1 // pred_fallthru
      _
    // Predicated region
    $region34: #{tpu_custom_call.1} parent=1 // pred_check
      _
    $region35: #{tpu_custom_call.1} parent=1 // pred_check_branch
      %444 = sbr.rel (0) target = $region37
    $region36: #{tpu_custom_call.1} parent=1 // pred_region
      %445 = dma.done [#allocation4], 16
    $region37: #{tpu_custom_call.1} parent=1 // pred_fallthru
      _
    %446 = vsyncpa [#allocation4], 1

</llo_original>
